<compile_context>
chip_gen: v5e
topology: v5e:2x2
jax: 0.10.0
libtpu: 0.0.40
codegen_flags: <defaults>
</compile_context>

<pallas_src>
import jax
import jax.numpy as jnp
from jax import lax
from jax.experimental import pallas as pl
from jax.experimental.pallas import tpu as pltpu

LANE = 128
MAX_BATCH_TILE = 1024   # keeps double-buffered f32 x tiles << scoped VMEM on all gens


def _round_up(n, m):
    return ((n + m - 1) // m) * m


def _pad2d(a, rows, cols):
    return jnp.pad(a, ((0, rows - a.shape[0]), (0, cols - a.shape[1])))


def _num_tensorcores():
    """Rough #TensorCores the grid's 'parallel' axis can shard across."""
    try:
        kind = jax.devices()[0].device_kind.lower()
    except Exception:
        return 1
    # v7x has 2 TCs per chip; v4/v5p megacore also benefits from 2 parallel steps.
    return 2 if any(t in kind for t in ("v7", "7x", "v4", "v5p")) else 1


def _pick_batch_tile(batch_rows, n_cores):
    # Exactly n_cores grid steps when possible (1 on v5e/v6e, 2 on v7x);
    # cap tile size for huge batches; floor at 16 rows (sublane-friendly).
    tile = -(-batch_rows // n_cores)          # ceil
    tile = _round_up(tile, 8)
    tile = min(tile, MAX_BATCH_TILE)
    return max(tile, 16)


def mlp_kernel(x_ref, w1_ref, ws_ref, bs_ref, o_ref):
    """Fully fused forward.  x/activations f32; weights bf16 (upcast for MXU)."""
    h = x_ref[...]                                            # [tile, F] f32

    # hidden_layer1: Linear(F,128) + ReLU  (Dropout = identity in eval)
    h = jnp.dot(h, w1_ref[...].astype(jnp.float32),
                preferred_element_type=jnp.float32) + bs_ref[0:1, :]
    h = jnp.maximum(h, 0.0)

    # hidden_layer2..5 (+ReLU) and output_layer (no ReLU); all padded to 128x128.
    for l in range(5):
        w = ws_ref[l].astype(jnp.float32)                     # [128,128]
        h = jnp.dot(h, w, preferred_element_type=jnp.float32) + bs_ref[l + 1:l + 2, :]
        if l < 4:
            h = jnp.maximum(h, 0.0)

    o_ref[...] = h                                            # [tile, 128] f32


def prepare_params(params):
    """One-time pad / cast / stack of the 6 (W, b) pairs into 3 kernel operands.

    Call this ONCE; reuse the result for every forward call.
    Zero padding keeps the math exact: padded weight rows/cols and bias lanes
    are 0, so padded activation lanes stay 0 through every layer.
    """
    w1, b1 = params[0]
    assert w1.shape[1] == LANE, "first hidden layer must be 128-wide"

    w1_p = w1.astype(jnp.bfloat16)                            # K axis left un-padded

    ws = []
    bias_rows = [jnp.pad(b1.reshape(-1).astype(jnp.float32),
                         (0, LANE - b1.size))]
    for (w, b) in params[1:]:
        ws.append(_pad2d(w.astype(jnp.float32), LANE, LANE).astype(jnp.bfloat16))
        bias_rows.append(jnp.pad(b.reshape(-1).astype(jnp.float32),
                                 (0, LANE - b.size)))
    w_stack = jnp.stack(ws)                                   # [5,128,128] bf16
    b_stack = jnp.stack(bias_rows)                            # [6,128] f32
    b_stack = jnp.pad(b_stack, ((0, 8 - b_stack.shape[0]), (0, 0)))   # [8,128]

    n_out = params[-1][0].shape[1]
    return w1_p, w_stack, b_stack, n_out


def dnn_forward(x, prepared, *, batch_tile=None):
    """x: [B, num_features] f32. prepared: output of prepare_params()."""
    w1, w_stack, b_stack, n_out = prepared
    B, F = x.shape
    assert F == w1.shape[0]

    if batch_tile is None:
        batch_tile = _pick_batch_tile(B, _num_tensorcores())
    B_pad = _round_up(B, batch_tile)

    x_p = x.astype(jnp.float32)
    if B_pad != B:
        x_p = jnp.pad(x_p, ((0, B_pad - B), (0, 0)))

    grid = (B_pad // batch_tile,)

    flops = 2 * B_pad * (F * LANE + 5 * LANE * LANE)
    bytes_accessed = (x_p.size * 4 + w1.size * 2 + w_stack.size * 2
                      + b_stack.size * 4 + B_pad * LANE * 4)
    cost = pl.CostEstimate(flops=flops, transcendentals=0,
                           bytes_accessed=bytes_accessed)

    out_pad = pl.pallas_call(
        mlp_kernel,
        out_shape=jax.ShapeDtypeStruct((B_pad, LANE), jnp.float32),
        grid_spec=pltpu.PrefetchScalarGridSpec(
            num_scalar_prefetch=0,
            grid=grid,
            in_specs=[
                # x: batch-tiled; last dim == full 784 extent (allowed un-padded).
                pl.BlockSpec((batch_tile, F), lambda i: (i, 0)),
                # Params: full-array blocks, constant index_map -> DMA'd once.
                pl.BlockSpec(w1.shape, lambda i: (0, 0)),
                pl.BlockSpec(w_stack.shape, lambda i: (0, 0, 0)),
                pl.BlockSpec(b_stack.shape, lambda i: (0, 0)),
            ],
            out_specs=pl.BlockSpec((batch_tile, LANE), lambda i: (i, 0)),
        ),
        compiler_params=pltpu.CompilerParams(
            dimension_semantics=("parallel",)),
        cost_estimate=cost,
    )(x_p, w1, w_stack, b_stack)

    # Strip batch padding and the 10 -> 128 lane padding.
    return out_pad[:B, :n_out]


def init_params(key, num_features):
    """Deterministic synthetic params matching DNN(num_features) layer shapes."""
    dims = [num_features, 128, 128, 64, 64, 32, 10]
    params = []
    for idx in range(len(dims) - 1):
        key, kw, kb = jax.random.split(key, 3)
        fan_in, fan_out = dims[idx], dims[idx + 1]
        scale = 1.0 / jnp.sqrt(jnp.float32(fan_in))
        w = jax.random.normal(kw, (fan_in, fan_out), jnp.float32) * scale
        b = jax.random.normal(kb, (fan_out,), jnp.float32) * scale
        params.append((w, b))
    return params


def dnn_reference(x, params):
    h = x
    for (w, b) in params[:-1]:
        h = jnp.maximum(
            jnp.dot(h, w, precision=lax.Precision.HIGHEST) + b.reshape(1, -1), 0.0)
    w, b = params[-1]
    return jnp.dot(h, w, precision=lax.Precision.HIGHEST) + b.reshape(1, -1)


if __name__ == "__main__":
    key = jax.random.PRNGKey(0)
    num_features = 784   # MNIST feature dim
    batch = 32

    key, kx = jax.random.split(key)
    x = jax.random.normal(kx, (batch, num_features), jnp.float32)
    params = init_params(key, num_features)

    prepared = prepare_params(params)          # one-time pad / cast / stack
    out = dnn_forward(x, prepared)
    out = jax.block_until_ready(out)

    ref = dnn_reference(x, params)
    assert out.shape == (batch, 10), out.shape
    # Only weights are bf16-quantized (activations stay f32) -> small, bounded
    # deviation from the pure-f32 reference.
    assert jnp.allclose(out, ref, atol=5e-2, rtol=5e-2), "mismatch vs reference"

    print("KERNEL_OK")
</pallas_src>

<mosaic_0001>
module attributes {stable_mosaic.version = 11 : i64} {
  func.func @mlp_kernel(%arg0: i32, %arg1: memref<32x784xf32, #tpu.memory_space<vmem>>, %arg2: memref<784x128xbf16, #tpu.memory_space<vmem>>, %arg3: memref<5x128x128xbf16, #tpu.memory_space<vmem>>, %arg4: memref<8x128xf32, #tpu.memory_space<vmem>>, %arg5: memref<32x128xf32, #tpu.memory_space<vmem>>) attributes {dimension_semantics = [#tpu.dimension_semantics<parallel>], iteration_bounds = array<i64: 1>, scalar_prefetch = 0 : i64, scratch_operands = 0 : i64, tpu.core_type = #tpu.core_type<tc>, window_params = [{transform_indices = @transform_0, window_bounds = array<i64: 32, 784>}, {pipeline_mode = #tpu.pipeline_mode<synchronous>, transform_indices = @transform_1, window_bounds = array<i64: 784, 128>}, {pipeline_mode = #tpu.pipeline_mode<synchronous>, transform_indices = @transform_2, window_bounds = array<i64: 5, 128, 128>}, {pipeline_mode = #tpu.pipeline_mode<synchronous>, transform_indices = @transform_3, window_bounds = array<i64: 8, 128>}, {transform_indices = @transform_4, window_bounds = array<i64: 32, 128>}]} {
    %c0 = arith.constant 0 : index
    %c0_0 = arith.constant 0 : index
    %0 = vector.load %arg1[%c0, %c0_0] : memref<32x784xf32, #tpu.memory_space<vmem>>, vector<32x784xf32>
    %c0_1 = arith.constant 0 : index
    %c0_2 = arith.constant 0 : index
    %1 = vector.load %arg2[%c0_1, %c0_2] : memref<784x128xbf16, #tpu.memory_space<vmem>>, vector<784x128xbf16>
    %2 = arith.extf %1 : vector<784x128xbf16> to vector<784x128xf32>
    %cst = arith.constant dense<0.000000e+00> : vector<32x128xf32>
    %3 = tpu.matmul %0, %2, %cst {dimension_numbers = #tpu.dot_dimension_numbers<[1], [0], [0], [1], [0, 0, 1, 1], [], []>} : vector<32x784xf32>, vector<784x128xf32>, vector<32x128xf32> -> vector<32x128xf32>
    %c0_3 = arith.constant 0 : index
    %c0_4 = arith.constant 0 : index
    %4 = vector.load %arg4[%c0_3, %c0_4] : memref<8x128xf32, #tpu.memory_space<vmem>>, vector<1x128xf32>
    %5 = vector.broadcast %4 : vector<1x128xf32> to vector<32x128xf32>
    %6 = arith.addf %3, %5 : vector<32x128xf32>
    %cst_5 = arith.constant 0.000000e+00 : f32
    %7 = vector.broadcast %cst_5 : f32 to vector<32x128xf32>
    %8 = arith.maximumf %6, %7 : vector<32x128xf32>
    %c0_6 = arith.constant 0 : index
    %c0_7 = arith.constant 0 : index
    %c0_8 = arith.constant 0 : index
    %9 = vector.load %arg3[%c0_6, %c0_7, %c0_8] : memref<5x128x128xbf16, #tpu.memory_space<vmem>>, vector<1x128x128xbf16>
    %10 = vector.shape_cast %9 : vector<1x128x128xbf16> to vector<128x128xbf16>
    %11 = arith.extf %10 : vector<128x128xbf16> to vector<128x128xf32>
    %cst_9 = arith.constant dense<0.000000e+00> : vector<32x128xf32>
    %12 = tpu.matmul %8, %11, %cst_9 {dimension_numbers = #tpu.dot_dimension_numbers<[1], [0], [0], [1], [0, 0, 1, 1], [], []>} : vector<32x128xf32>, vector<128x128xf32>, vector<32x128xf32> -> vector<32x128xf32>
    %c1 = arith.constant 1 : index
    %c0_10 = arith.constant 0 : index
    %13 = vector.load %arg4[%c1, %c0_10] : memref<8x128xf32, #tpu.memory_space<vmem>>, vector<1x128xf32>
    %14 = vector.broadcast %13 : vector<1x128xf32> to vector<32x128xf32>
    %15 = arith.addf %12, %14 : vector<32x128xf32>
    %cst_11 = arith.constant 0.000000e+00 : f32
    %16 = vector.broadcast %cst_11 : f32 to vector<32x128xf32>
    %17 = arith.maximumf %15, %16 : vector<32x128xf32>
    %c1_12 = arith.constant 1 : index
    %c0_13 = arith.constant 0 : index
    %c0_14 = arith.constant 0 : index
    %18 = vector.load %arg3[%c1_12, %c0_13, %c0_14] : memref<5x128x128xbf16, #tpu.memory_space<vmem>>, vector<1x128x128xbf16>
    %19 = vector.shape_cast %18 : vector<1x128x128xbf16> to vector<128x128xbf16>
    %20 = arith.extf %19 : vector<128x128xbf16> to vector<128x128xf32>
    %cst_15 = arith.constant dense<0.000000e+00> : vector<32x128xf32>
    %21 = tpu.matmul %17, %20, %cst_15 {dimension_numbers = #tpu.dot_dimension_numbers<[1], [0], [0], [1], [0, 0, 1, 1], [], []>} : vector<32x128xf32>, vector<128x128xf32>, vector<32x128xf32> -> vector<32x128xf32>
    %c2 = arith.constant 2 : index
    %c0_16 = arith.constant 0 : index
    %22 = vector.load %arg4[%c2, %c0_16] : memref<8x128xf32, #tpu.memory_space<vmem>>, vector<1x128xf32>
    %23 = vector.broadcast %22 : vector<1x128xf32> to vector<32x128xf32>
    %24 = arith.addf %21, %23 : vector<32x128xf32>
    %cst_17 = arith.constant 0.000000e+00 : f32
    %25 = vector.broadcast %cst_17 : f32 to vector<32x128xf32>
    %26 = arith.maximumf %24, %25 : vector<32x128xf32>
    %c2_18 = arith.constant 2 : index
    %c0_19 = arith.constant 0 : index
    %c0_20 = arith.constant 0 : index
    %27 = vector.load %arg3[%c2_18, %c0_19, %c0_20] : memref<5x128x128xbf16, #tpu.memory_space<vmem>>, vector<1x128x128xbf16>
    %28 = vector.shape_cast %27 : vector<1x128x128xbf16> to vector<128x128xbf16>
    %29 = arith.extf %28 : vector<128x128xbf16> to vector<128x128xf32>
    %cst_21 = arith.constant dense<0.000000e+00> : vector<32x128xf32>
    %30 = tpu.matmul %26, %29, %cst_21 {dimension_numbers = #tpu.dot_dimension_numbers<[1], [0], [0], [1], [0, 0, 1, 1], [], []>} : vector<32x128xf32>, vector<128x128xf32>, vector<32x128xf32> -> vector<32x128xf32>
    %c3 = arith.constant 3 : index
    %c0_22 = arith.constant 0 : index
    %31 = vector.load %arg4[%c3, %c0_22] : memref<8x128xf32, #tpu.memory_space<vmem>>, vector<1x128xf32>
    %32 = vector.broadcast %31 : vector<1x128xf32> to vector<32x128xf32>
    %33 = arith.addf %30, %32 : vector<32x128xf32>
    %cst_23 = arith.constant 0.000000e+00 : f32
    %34 = vector.broadcast %cst_23 : f32 to vector<32x128xf32>
    %35 = arith.maximumf %33, %34 : vector<32x128xf32>
    %c3_24 = arith.constant 3 : index
    %c0_25 = arith.constant 0 : index
    %c0_26 = arith.constant 0 : index
    %36 = vector.load %arg3[%c3_24, %c0_25, %c0_26] : memref<5x128x128xbf16, #tpu.memory_space<vmem>>, vector<1x128x128xbf16>
    %37 = vector.shape_cast %36 : vector<1x128x128xbf16> to vector<128x128xbf16>
    %38 = arith.extf %37 : vector<128x128xbf16> to vector<128x128xf32>
    %cst_27 = arith.constant dense<0.000000e+00> : vector<32x128xf32>
    %39 = tpu.matmul %35, %38, %cst_27 {dimension_numbers = #tpu.dot_dimension_numbers<[1], [0], [0], [1], [0, 0, 1, 1], [], []>} : vector<32x128xf32>, vector<128x128xf32>, vector<32x128xf32> -> vector<32x128xf32>
    %c4 = arith.constant 4 : index
    %c0_28 = arith.constant 0 : index
    %40 = vector.load %arg4[%c4, %c0_28] : memref<8x128xf32, #tpu.memory_space<vmem>>, vector<1x128xf32>
    %41 = vector.broadcast %40 : vector<1x128xf32> to vector<32x128xf32>
    %42 = arith.addf %39, %41 : vector<32x128xf32>
    %cst_29 = arith.constant 0.000000e+00 : f32
    %43 = vector.broadcast %cst_29 : f32 to vector<32x128xf32>
    %44 = arith.maximumf %42, %43 : vector<32x128xf32>
    %c4_30 = arith.constant 4 : index
    %c0_31 = arith.constant 0 : index
    %c0_32 = arith.constant 0 : index
    %45 = vector.load %arg3[%c4_30, %c0_31, %c0_32] : memref<5x128x128xbf16, #tpu.memory_space<vmem>>, vector<1x128x128xbf16>
    %46 = vector.shape_cast %45 : vector<1x128x128xbf16> to vector<128x128xbf16>
    %47 = arith.extf %46 : vector<128x128xbf16> to vector<128x128xf32>
    %cst_33 = arith.constant dense<0.000000e+00> : vector<32x128xf32>
    %48 = tpu.matmul %44, %47, %cst_33 {dimension_numbers = #tpu.dot_dimension_numbers<[1], [0], [0], [1], [0, 0, 1, 1], [], []>} : vector<32x128xf32>, vector<128x128xf32>, vector<32x128xf32> -> vector<32x128xf32>
    %c5 = arith.constant 5 : index
    %c0_34 = arith.constant 0 : index
    %49 = vector.load %arg4[%c5, %c0_34] : memref<8x128xf32, #tpu.memory_space<vmem>>, vector<1x128xf32>
    %50 = vector.broadcast %49 : vector<1x128xf32> to vector<32x128xf32>
    %51 = arith.addf %48, %50 : vector<32x128xf32>
    %c0_35 = arith.constant 0 : index
    %c0_36 = arith.constant 0 : index
    %52 = vector.load %arg5[%c0_35, %c0_36] : memref<32x128xf32, #tpu.memory_space<vmem>>, vector<32x128xf32>
    tpu.vector_store %arg5[%c0_35, %c0_36], %51 {strides = array<i32>} : memref<32x128xf32, #tpu.memory_space<vmem>>, vector<32x128xf32>,
    return
  }
  func.func @transform_0(%arg0: i32) -> (i32, i32) {
    %c0_i32 = arith.constant 0 : i32
    %c0_i32_0 = arith.constant 0 : i32
    return %arg0, %c0_i32 : i32, i32
  }
  func.func @transform_1(%arg0: i32) -> (i32, i32) {
    %c0_i32 = arith.constant 0 : i32
    %c0_i32_0 = arith.constant 0 : i32
    %c0_i32_1 = arith.constant 0 : i32
    return %c0_i32, %c0_i32_0 : i32, i32
  }
  func.func @transform_2(%arg0: i32) -> (i32, i32, i32) {
    %c0_i32 = arith.constant 0 : i32
    %c0_i32_0 = arith.constant 0 : i32
    %c0_i32_1 = arith.constant 0 : i32
    %c0_i32_2 = arith.constant 0 : i32
    return %c0_i32, %c0_i32_0, %c0_i32_1 : i32, i32, i32
  }
  func.func @transform_3(%arg0: i32) -> (i32, i32) {
    %c0_i32 = arith.constant 0 : i32
    %c0_i32_0 = arith.constant 0 : i32
    %c0_i32_1 = arith.constant 0 : i32
    return %c0_i32, %c0_i32_0 : i32, i32
  }
  func.func @transform_4(%arg0: i32) -> (i32, i32) {
    %c0_i32 = arith.constant 0 : i32
    %c0_i32_0 = arith.constant 0 : i32
    return %arg0, %c0_i32 : i32, i32
  }
}

</mosaic_0001>

<llo_original>
// kernel: tpu_custom_call.1
$region0: #{tpu_custom_call.1}
  #allocation0 [shape = 'u32[]', space=smem, size = 0x4, offset = 0x4, fixed_abs, tag = 'smem constant byte address 0x4 - core index']
  #allocation1 [shape = 'u32[72,128]{1,0:T(1,128)}', space=vmem, size = 0x9000, scoped, tag = 'internal scratch']
  %s0 = inlined_call_operand.hbm [shape: f32[32,784], index: 0, kind: input, shape index: {}]
  %s1 = inlined_call_operand.hbm [shape: bf16[784,128], index: 1, kind: input, shape index: {}]
  %s2 = inlined_call_operand.hbm [shape: bf16[5,128,128], index: 2, kind: input, shape index: {}]
  %s3 = inlined_call_operand.hbm [shape: f32[8,128], index: 3, kind: input, shape index: {}]
  %s4 = inlined_call_operand.hbm [shape: f32[32,128], index: 4, kind: output, shape index: {}]
  %s5 = sld [smem:[#allocation0]]
  $region42: #{tpu_custom_call.1} parent=0
    _
  %s7 = ssub.s32 1, %s5
  %s8 = scalar_select 0, %s7, %s5
  $region1: #{tpu_custom_call.1} parent=0
    #allocation2 [shape = 'u8[114688]{0}', space=vmem, size = 0x1c000, scoped, tag = 'input window, operand 0, single buffered']
    #allocation3 [shape = 's32[1]{0}', space=sflag, size = 0x4, scoped, tag = 'scoped memory for tpu_custom_call.1']
    #allocation4 [shape = 's32[1]{0}', space=sflag, size = 0x4, scoped, tag = 'scoped memory for tpu_custom_call.1']
    #allocation5 [shape = 'u8[200704]{0}', space=vmem, size = 0x31000, scoped, tag = 'input window, operand 1, single buffered']
    #allocation6 [shape = 's32[1]{0}', space=sflag, size = 0x4, scoped, tag = 'scoped memory for tpu_custom_call.1']
    #allocation7 [shape = 'u8[163840]{0}', space=vmem, size = 0x28000, scoped, tag = 'input window, operand 2, single buffered']
    #allocation8 [shape = 'u8[4096]{0}', space=vmem, size = 0x1000, scoped, tag = 'input window, operand 3, single buffered']
    #allocation9 [shape = 's32[1]{0}', space=sflag, size = 0x4, scoped, tag = 'scoped memory for tpu_custom_call.1']
    #allocation10 [shape = 'u8[16384]{0}', space=vmem, size = 0x4000, scoped, tag = 'output window, operand 0, single buffered']
    %9 = vsyncpa [#allocation3], 0
    %10 = vsyncpa [#allocation6], 0
    %11 = vsyncpa [#allocation9], 0
    %12 = vsyncpa [#allocation4], 0
    // Predicated region
    $region2: #{tpu_custom_call.1} parent=1 // pred_check
      _
    $region3: #{tpu_custom_call.1} parent=1 // pred_check_branch
      %14 = sbr.rel (0) target = $region5
    $region4: #{tpu_custom_call.1} parent=1 // pred_region
      %16 = vsyncadd [#allocation3], 0
      %s17 = sshll.u32 %s0, 4
      %s18 = int_to_ptr.hbm [resolvable:$true] %s17
      %s19 = sshll.u32 [#allocation2], 4
      %s20 = int_to_ptr.vmem [resolvable:$true] %s19
      %25 = dma.hbm_to_vmem [thread:$0]  %s18, 3584, %s20, [#allocation3], 896, 896, 56
    $region5: #{tpu_custom_call.1} parent=1 // pred_fallthru
      _
    // Predicated region
    $region6: #{tpu_custom_call.1} parent=1 // pred_check
      _
    $region7: #{tpu_custom_call.1} parent=1 // pred_check_branch
      %27 = sbr.rel (0) target = $region9
    $region8: #{tpu_custom_call.1} parent=1 // pred_region
      %29 = vsyncadd [#allocation6], 0
      %s30 = sshll.u32 %s1, 4
      %s31 = int_to_ptr.hbm [resolvable:$true] %s30
      %s32 = sshll.u32 [#allocation5], 4
      %s33 = int_to_ptr.vmem [resolvable:$true] %s32
      %38 = dma.hbm_to_vmem [thread:$0]  %s31, 6272, %s33, [#allocation6], 64, 64, 4
    $region9: #{tpu_custom_call.1} parent=1 // pred_fallthru
      _
    // Predicated region
    $region10: #{tpu_custom_call.1} parent=1 // pred_check
      _
    $region11: #{tpu_custom_call.1} parent=1 // pred_check_branch
      %40 = sbr.rel (0) target = $region13
    $region12: #{tpu_custom_call.1} parent=1 // pred_region
      %42 = vsyncadd [#allocation6], 0
      %s43 = sshll.u32 %s2, 4
      %s44 = int_to_ptr.hbm [resolvable:$true] %s43
      %s45 = sshll.u32 [#allocation7], 4
      %s46 = int_to_ptr.vmem [resolvable:$true] %s45
      %51 = dma.hbm_to_vmem [thread:$0]  %s44, 5120, %s46, [#allocation6], 64, 64, 4
    $region13: #{tpu_custom_call.1} parent=1 // pred_fallthru
      _
    // Predicated region
    $region14: #{tpu_custom_call.1} parent=1 // pred_check
      _
    $region15: #{tpu_custom_call.1} parent=1 // pred_check_branch
      %53 = sbr.rel (0) target = $region17
    $region16: #{tpu_custom_call.1} parent=1 // pred_region
      %55 = vsyncadd [#allocation9], 0
      %s57 = sshll.u32 %s3, 4
      %s58 = int_to_ptr.hbm [resolvable:$true] %s57
      %s59 = sshll.u32 [#allocation8], 4
      %s60 = int_to_ptr.vmem [resolvable:$true] %s59
      %62 = dma.hbm_to_vmem [thread:$0]  %s58, 128, %s60, [#allocation9]
    $region17: #{tpu_custom_call.1} parent=1 // pred_fallthru
      _
    // Predicated region
    $region18: #{tpu_custom_call.1} parent=1 // pred_check
      _
    $region19: #{tpu_custom_call.1} parent=1 // pred_check_branch
      %64 = sbr.rel (0) target = $region21
    $region20: #{tpu_custom_call.1} parent=1 // pred_region
      %66 = dma.done [#allocation3], 3584
    $region21: #{tpu_custom_call.1} parent=1 // pred_fallthru
      _
    // Predicated region
    $region22: #{tpu_custom_call.1} parent=1 // pred_check
      _
    $region23: #{tpu_custom_call.1} parent=1 // pred_check_branch
      %68 = sbr.rel (0) target = $region25
    $region24: #{tpu_custom_call.1} parent=1 // pred_region
      %70 = dma.done [#allocation6], 6272
    $region25: #{tpu_custom_call.1} parent=1 // pred_fallthru
      _
    // Predicated region
    $region26: #{tpu_custom_call.1} parent=1 // pred_check
      _
    $region27: #{tpu_custom_call.1} parent=1 // pred_check_branch
      %72 = sbr.rel (0) target = $region29
    $region28: #{tpu_custom_call.1} parent=1 // pred_region
      %74 = dma.done [#allocation6], 5120
    $region29: #{tpu_custom_call.1} parent=1 // pred_fallthru
      _
    // Predicated region
    $region30: #{tpu_custom_call.1} parent=1 // pred_check
      _
    $region31: #{tpu_custom_call.1} parent=1 // pred_check_branch
      %76 = sbr.rel (0) target = $region33
    $region32: #{tpu_custom_call.1} parent=1 // pred_region
      %78 = dma.done [#allocation9], 128
    $region33: #{tpu_custom_call.1} parent=1 // pred_fallthru
      _
    %v79 = vld [vmem:[#allocation2] sm:$0xff]
    %v80 = vld [vmem:[#allocation2 + $0x8] sm:$0xff]
    %v81 = vld [vmem:[#allocation2 + $0x10] sm:$0xff]
    %v82 = vld [vmem:[#allocation2 + $0x18] sm:$0xff]
    %v83 = vld [vmem:[#allocation2 + $0x20] sm:$0xff]
    %v84 = vld [vmem:[#allocation2 + $0x28] sm:$0xff]
    %v85 = vld [vmem:[#allocation2 + $0x30] sm:$0xff]
    %v86 = vld [vmem:[#allocation2 + $0x38] sm:$0xff]
    %v87 = vld [vmem:[#allocation2 + $0x40] sm:$0xff]
    %v88 = vld [vmem:[#allocation2 + $0x48] sm:$0xff]
    %v89 = vld [vmem:[#allocation2 + $0x50] sm:$0xff]
    %v90 = vld [vmem:[#allocation2 + $0x58] sm:$0xff]
    %v91 = vld [vmem:[#allocation2 + $0x60] sm:$0xff]
    %v92 = vld [vmem:[#allocation2 + $0x68] sm:$0xff]
    %v93 = vld [vmem:[#allocation2 + $0x70] sm:$0xff]
    %v94 = vld [vmem:[#allocation2 + $0x78] sm:$0xff]
    %v95 = vld [vmem:[#allocation2 + $0x80] sm:$0xff]
    %v96 = vld [vmem:[#allocation2 + $0x88] sm:$0xff]
    %v97 = vld [vmem:[#allocation2 + $0x90] sm:$0xff]
    %v98 = vld [vmem:[#allocation2 + $0x98] sm:$0xff]
    %v99 = vld [vmem:[#allocation2 + $0xa0] sm:$0xff]
    %v100 = vld [vmem:[#allocation2 + $0xa8] sm:$0xff]
    %v101 = vld [vmem:[#allocation2 + $0xb0] sm:$0xff]
    %v102 = vld [vmem:[#allocation2 + $0xb8] sm:$0xff]
    %v103 = vld [vmem:[#allocation2 + $0xc0] sm:$0xff]
    %v104 = vld [vmem:[#allocation2 + $0xc8] sm:$0xff]
    %v105 = vld [vmem:[#allocation2 + $0xd0] sm:$0xff]
    %v106 = vld [vmem:[#allocation2 + $0xd8] sm:$0xff]
    %v107 = vld [vmem:[#allocation5] sm:$0xf]
    %v108 = vld [vmem:[#allocation5 + $0x4] sm:$0xf]
    %v109 = vld [vmem:[#allocation5 + $0x8] sm:$0xf]
    %v110 = vld [vmem:[#allocation5 + $0xc] sm:$0xf]
    %v111 = vld [vmem:[#allocation5 + $0x10] sm:$0xf]
    %v112 = vld [vmem:[#allocation5 + $0x14] sm:$0xf]
    %v113 = vld [vmem:[#allocation5 + $0x18] sm:$0xf]
    %v114 = vld [vmem:[#allocation5 + $0x1c] sm:$0xf]
    %v115 = vld [vmem:[#allocation5 + $0x20] sm:$0xf]
    %v116 = vld [vmem:[#allocation5 + $0x24] sm:$0xf]
    %v117 = vld [vmem:[#allocation5 + $0x28] sm:$0xf]
    %v118 = vld [vmem:[#allocation5 + $0x2c] sm:$0xf]
    %v119 = vld [vmem:[#allocation5 + $0x30] sm:$0xf]
    %v120 = vld [vmem:[#allocation5 + $0x34] sm:$0xf]
    %v121 = vld [vmem:[#allocation5 + $0x38] sm:$0xf]
    %v122 = vld [vmem:[#allocation5 + $0x3c] sm:$0xf]
    %v123 = vld [vmem:[#allocation5 + $0x40] sm:$0xf]
    %v124 = vld [vmem:[#allocation5 + $0x44] sm:$0xf]
    %v125 = vld [vmem:[#allocation5 + $0x48] sm:$0xf]
    %v126 = vld [vmem:[#allocation5 + $0x4c] sm:$0xf]
    %v127 = vld [vmem:[#allocation5 + $0x50] sm:$0xf]
    %v128 = vld [vmem:[#allocation5 + $0x54] sm:$0xf]
    %v129 = vld [vmem:[#allocation5 + $0x58] sm:$0xf]
    %v130 = vld [vmem:[#allocation5 + $0x5c] sm:$0xf]
    %v131 = vld [vmem:[#allocation5 + $0x60] sm:$0xf]
    %v132 = vld [vmem:[#allocation5 + $0x64] sm:$0xf]
    %v133 = vld [vmem:[#allocation5 + $0x68] sm:$0xf]
    %v134 = vld [vmem:[#allocation5 + $0x6c] sm:$0xf]
    %v135 = vld [vmem:[#allocation5 + $0x70] sm:$0xf]
    %v136 = vld [vmem:[#allocation5 + $0x74] sm:$0xf]
    %v137 = vld [vmem:[#allocation5 + $0x78] sm:$0xf]
    %v138 = vld [vmem:[#allocation5 + $0x7c] sm:$0xf]
    %v139 = vld [vmem:[#allocation5 + $0x80] sm:$0xf]
    %v140 = vld [vmem:[#allocation5 + $0x84] sm:$0xf]
    %v141 = vld [vmem:[#allocation5 + $0x88] sm:$0xf]
    %v142 = vld [vmem:[#allocation5 + $0x8c] sm:$0xf]
    %v143 = vld [vmem:[#allocation5 + $0x90] sm:$0xf]
    %v144 = vld [vmem:[#allocation5 + $0x94] sm:$0xf]
    %v145 = vld [vmem:[#allocation5 + $0x98] sm:$0xf]
    %v146 = vld [vmem:[#allocation5 + $0x9c] sm:$0xf]
    %v147 = vld [vmem:[#allocation5 + $0xa0] sm:$0xf]
    %v148 = vld [vmem:[#allocation5 + $0xa4] sm:$0xf]
    %v149 = vld [vmem:[#allocation5 + $0xa8] sm:$0xf]
    %v150 = vld [vmem:[#allocation5 + $0xac] sm:$0xf]
    %v151 = vld [vmem:[#allocation5 + $0xb0] sm:$0xf]
    %v152 = vld [vmem:[#allocation5 + $0xb4] sm:$0xf]
    %v153 = vld [vmem:[#allocation5 + $0xb8] sm:$0xf]
    %v154 = vld [vmem:[#allocation5 + $0xbc] sm:$0xf]
    %v155 = vld [vmem:[#allocation5 + $0xc0] sm:$0xf]
    %v156 = vld [vmem:[#allocation5 + $0xc4] sm:$0xf]
    %v157 = vld [vmem:[#allocation5 + $0xc8] sm:$0xf]
    %v158 = vld [vmem:[#allocation5 + $0xcc] sm:$0xf]
    %v159 = vld [vmem:[#allocation5 + $0xd0] sm:$0xf]
    %v160 = vld [vmem:[#allocation5 + $0xd4] sm:$0xf]
    %v161 = vld [vmem:[#allocation5 + $0xd8] sm:$0xf]
    %v162 = vld [vmem:[#allocation5 + $0xdc] sm:$0xf]
    %v163 = vld [vmem:[#allocation5 + $0xe0] sm:$0xf]
    %v164 = vld [vmem:[#allocation5 + $0xe4] sm:$0xf]
    %v165 = vld [vmem:[#allocation5 + $0xe8] sm:$0xf]
    %v166 = vld [vmem:[#allocation5 + $0xec] sm:$0xf]
    %v167 = vld [vmem:[#allocation5 + $0xf0] sm:$0xf]
    %v168 = vld [vmem:[#allocation5 + $0xf4] sm:$0xf]
    %v169 = vld [vmem:[#allocation5 + $0xf8] sm:$0xf]
    %v170 = vld [vmem:[#allocation5 + $0xfc] sm:$0xf]
    %v171 = vld [vmem:[#allocation5 + $0x100] sm:$0xf]
    %v172 = vld [vmem:[#allocation5 + $0x104] sm:$0xf]
    %v173 = vld [vmem:[#allocation5 + $0x108] sm:$0xf]
    %v174 = vld [vmem:[#allocation5 + $0x10c] sm:$0xf]
    %v175 = vld [vmem:[#allocation5 + $0x110] sm:$0xf]
    %v176 = vld [vmem:[#allocation5 + $0x114] sm:$0xf]
    %v177 = vld [vmem:[#allocation5 + $0x118] sm:$0xf]
    %v178 = vld [vmem:[#allocation5 + $0x11c] sm:$0xf]
    %v179 = vld [vmem:[#allocation5 + $0x120] sm:$0xf]
    %v180 = vld [vmem:[#allocation5 + $0x124] sm:$0xf]
    %v181 = vld [vmem:[#allocation5 + $0x128] sm:$0xf]
    %v182 = vld [vmem:[#allocation5 + $0x12c] sm:$0xf]
    %v183 = vld [vmem:[#allocation5 + $0x130] sm:$0xf]
    %v184 = vld [vmem:[#allocation5 + $0x134] sm:$0xf]
    %v185 = vld [vmem:[#allocation5 + $0x138] sm:$0xf]
    %v186 = vld [vmem:[#allocation5 + $0x13c] sm:$0xf]
    %v187 = vld [vmem:[#allocation5 + $0x140] sm:$0xf]
    %v188 = vld [vmem:[#allocation5 + $0x144] sm:$0xf]
    %v189 = vld [vmem:[#allocation5 + $0x148] sm:$0xf]
    %v190 = vld [vmem:[#allocation5 + $0x14c] sm:$0xf]
    %v191 = vld [vmem:[#allocation5 + $0x150] sm:$0xf]
    %v192 = vld [vmem:[#allocation5 + $0x154] sm:$0xf]
    %v193 = vld [vmem:[#allocation5 + $0x158] sm:$0xf]
    %v194 = vld [vmem:[#allocation5 + $0x15c] sm:$0xf]
    %v195 = vld [vmem:[#allocation5 + $0x160] sm:$0xf]
    %v196 = vld [vmem:[#allocation5 + $0x164] sm:$0xf]
    %v197 = vld [vmem:[#allocation5 + $0x168] sm:$0xf]
    %v198 = vld [vmem:[#allocation5 + $0x16c] sm:$0xf]
    %v199 = vld [vmem:[#allocation5 + $0x170] sm:$0xf]
    %v200 = vld [vmem:[#allocation5 + $0x174] sm:$0xf]
    %v201 = vld [vmem:[#allocation5 + $0x178] sm:$0xf]
    %v202 = vld [vmem:[#allocation5 + $0x17c] sm:$0xf]
    %v203 = vld [vmem:[#allocation5 + $0x180] sm:$0xf]
    %v204 = vld [vmem:[#allocation5 + $0x184] sm:$0xf]
    %v205 = vunpack.c.l.bf16 %v107
    %v206 = vunpack.c.l.bf16 %v108
    %v207 = vunpack.c.l.bf16 %v109
    %v208 = vunpack.c.l.bf16 %v110
    %v209 = vunpack.c.l.bf16 %v111
    %v210 = vunpack.c.l.bf16 %v112
    %v211 = vunpack.c.l.bf16 %v113
    %v212 = vunpack.c.l.bf16 %v114
    %v213 = vunpack.c.l.bf16 %v115
    %v214 = vunpack.c.l.bf16 %v116
    %v215 = vunpack.c.l.bf16 %v117
    %v216 = vunpack.c.l.bf16 %v118
    %v217 = vunpack.c.l.bf16 %v119
    %v218 = vunpack.c.l.bf16 %v120
    %v219 = vunpack.c.l.bf16 %v121
    %v220 = vunpack.c.l.bf16 %v122
    %v221 = vunpack.c.l.bf16 %v123
    %v222 = vunpack.c.l.bf16 %v124
    %v223 = vunpack.c.l.bf16 %v125
    %v224 = vunpack.c.l.bf16 %v126
    %v225 = vunpack.c.l.bf16 %v127
    %v226 = vunpack.c.l.bf16 %v128
    %v227 = vunpack.c.l.bf16 %v129
    %v228 = vunpack.c.l.bf16 %v130
    %v229 = vunpack.c.l.bf16 %v131
    %v230 = vunpack.c.l.bf16 %v132
    %v231 = vunpack.c.l.bf16 %v133
    %v232 = vunpack.c.l.bf16 %v134
    %v233 = vunpack.c.l.bf16 %v135
    %v234 = vunpack.c.l.bf16 %v136
    %v235 = vunpack.c.l.bf16 %v137
    %v236 = vunpack.c.l.bf16 %v138
    %v237 = vunpack.c.l.bf16 %v139
    %v238 = vunpack.c.l.bf16 %v140
    %v239 = vunpack.c.l.bf16 %v141
    %v240 = vunpack.c.l.bf16 %v142
    %v241 = vunpack.c.l.bf16 %v143
    %v242 = vunpack.c.l.bf16 %v144
    %v243 = vunpack.c.l.bf16 %v145
    %v244 = vunpack.c.l.bf16 %v146
    %v245 = vunpack.c.l.bf16 %v147
    %v246 = vunpack.c.l.bf16 %v148
    %v247 = vunpack.c.l.bf16 %v149
    %v248 = vunpack.c.l.bf16 %v150
    %v249 = vunpack.c.l.bf16 %v151
    %v250 = vunpack.c.l.bf16 %v152
    %v251 = vunpack.c.l.bf16 %v153
    %v252 = vunpack.c.l.bf16 %v154
    %v253 = vunpack.c.l.bf16 %v155
    %v254 = vunpack.c.l.bf16 %v156
    %v255 = vunpack.c.l.bf16 %v157
    %v256 = vunpack.c.l.bf16 %v158
    %v257 = vunpack.c.l.bf16 %v159
    %v258 = vunpack.c.l.bf16 %v160
    %v259 = vunpack.c.l.bf16 %v161
    %v260 = vunpack.c.l.bf16 %v162
    %v261 = vunpack.c.l.bf16 %v163
    %v262 = vunpack.c.l.bf16 %v164
    %v263 = vunpack.c.l.bf16 %v165
    %v264 = vunpack.c.l.bf16 %v166
    %v265 = vunpack.c.l.bf16 %v167
    %v266 = vunpack.c.l.bf16 %v168
    %v267 = vunpack.c.l.bf16 %v169
    %v268 = vunpack.c.l.bf16 %v170
    %v269 = vunpack.c.l.bf16 %v171
    %v270 = vunpack.c.l.bf16 %v172
    %v271 = vunpack.c.l.bf16 %v173
    %v272 = vunpack.c.l.bf16 %v174
    %v273 = vunpack.c.l.bf16 %v175
    %v274 = vunpack.c.l.bf16 %v176
    %v275 = vunpack.c.l.bf16 %v177
    %v276 = vunpack.c.l.bf16 %v178
    %v277 = vunpack.c.l.bf16 %v179
    %v278 = vunpack.c.l.bf16 %v180
    %v279 = vunpack.c.l.bf16 %v181
    %v280 = vunpack.c.l.bf16 %v182
    %v281 = vunpack.c.l.bf16 %v183
    %v282 = vunpack.c.l.bf16 %v184
    %v283 = vunpack.c.l.bf16 %v185
    %v284 = vunpack.c.l.bf16 %v186
    %v285 = vunpack.c.l.bf16 %v187
    %v286 = vunpack.c.l.bf16 %v188
    %v287 = vunpack.c.l.bf16 %v189
    %v288 = vunpack.c.l.bf16 %v190
    %v289 = vunpack.c.l.bf16 %v191
    %v290 = vunpack.c.l.bf16 %v192
    %v291 = vunpack.c.l.bf16 %v193
    %v292 = vunpack.c.l.bf16 %v194
    %v293 = vunpack.c.l.bf16 %v195
    %v294 = vunpack.c.l.bf16 %v196
    %v295 = vunpack.c.l.bf16 %v197
    %v296 = vunpack.c.l.bf16 %v198
    %v297 = vunpack.c.l.bf16 %v199
    %v298 = vunpack.c.l.bf16 %v200
    %v299 = vunpack.c.l.bf16 %v201
    %v300 = vunpack.c.l.bf16 %v202
    %v301 = vunpack.c.l.bf16 %v203
    %v302 = vunpack.c.l.bf16 %v204
    %v303 = vld [vmem:[#allocation8] sm:$0x1]
    %v304 = vperm.slane %v303, 0
    %vm305 = vcmask 130048
    %v307 = vsel %vm305, %v85, 0
    %v310 = vsel %vm305, %v92, 0
    %v313 = vsel %vm305, %v99, 0
    %v316 = vsel %vm305, %v106, 0
    %318 = vmatpush.msra.mxu0 %v220
    %319 = vmatpush.msra.mxu0 %v219
    %320 = vmatpush.msra.mxu0 %v218
    %321 = vmatpush.msra.mxu0 %v217
    %322 = vmatpush.msra.mxu0 %v216
    %323 = vmatpush.msra.mxu0 %v215
    %324 = vmatpush.msra.mxu0 %v214
    %325 = vmatpush.msra.mxu0 %v213
    %326 = vmatpush.msra.mxu0 %v212
    %327 = vmatpush.msra.mxu0 %v211
    %328 = vmatpush.msra.mxu0 %v210
    %329 = vmatpush.msra.mxu0 %v209
    %330 = vmatpush.msra.mxu0 %v208
    %331 = vmatpush.msra.mxu0 %v207
    %332 = vmatpush.msra.mxu0 %v206
    %333 = vmatpush.msra.mxu0 %v205
    %334 = vmatmul.f32.gmra.mxu0 %v79
    %v335 = vpop.f32.mrf.mxu0
    %v336 = vadd.f32 %v304, %v335
    %337 = vmatmul.f32.gmra.mxu0 %v86
    %v338 = vpop.f32.mrf.mxu0
    %v339 = vadd.f32 %v304, %v338
    %340 = vmatmul.f32.gmra.mxu0 %v93
    %v341 = vpop.f32.mrf.mxu0
    %v342 = vadd.f32 %v304, %v341
    %343 = vmatmul.f32.gmra.mxu0 %v100
    %v344 = vpop.f32.mrf.mxu0
    %v345 = vadd.f32 %v304, %v344
    %346 = vdwg.mxu0
    %347 = vmatpush.msra.mxu0 %v236
    %348 = vmatpush.msra.mxu0 %v235
    %349 = vmatpush.msra.mxu0 %v234
    %350 = vmatpush.msra.mxu0 %v233
    %351 = vmatpush.msra.mxu0 %v232
    %352 = vmatpush.msra.mxu0 %v231
    %353 = vmatpush.msra.mxu0 %v230
    %354 = vmatpush.msra.mxu0 %v229
    %355 = vmatpush.msra.mxu0 %v228
    %356 = vmatpush.msra.mxu0 %v227
    %357 = vmatpush.msra.mxu0 %v226
    %358 = vmatpush.msra.mxu0 %v225
    %359 = vmatpush.msra.mxu0 %v224
    %360 = vmatpush.msra.mxu0 %v223
    %361 = vmatpush.msra.mxu0 %v222
    %362 = vmatpush.msra.mxu0 %v221
    %363 = vmatmul.f32.gmra.mxu0 %v80
    %v364 = vpop.f32.mrf.mxu0
    %v365 = vadd.f32 %v336, %v364
    %366 = vmatmul.f32.gmra.mxu0 %v87
    %v367 = vpop.f32.mrf.mxu0
    %v368 = vadd.f32 %v339, %v367
    %369 = vmatmul.f32.gmra.mxu0 %v94
    %v370 = vpop.f32.mrf.mxu0
    %v371 = vadd.f32 %v342, %v370
    %372 = vmatmul.f32.gmra.mxu0 %v101
    %v373 = vpop.f32.mrf.mxu0
    %v374 = vadd.f32 %v345, %v373
    %375 = vdwg.mxu0
    %376 = vmatpush.msra.mxu0 %v252
    %377 = vmatpush.msra.mxu0 %v251
    %378 = vmatpush.msra.mxu0 %v250
    %379 = vmatpush.msra.mxu0 %v249
    %380 = vmatpush.msra.mxu0 %v248
    %381 = vmatpush.msra.mxu0 %v247
    %382 = vmatpush.msra.mxu0 %v246
    %383 = vmatpush.msra.mxu0 %v245
    %384 = vmatpush.msra.mxu0 %v244
    %385 = vmatpush.msra.mxu0 %v243
    %386 = vmatpush.msra.mxu0 %v242
    %387 = vmatpush.msra.mxu0 %v241
    %388 = vmatpush.msra.mxu0 %v240
    %389 = vmatpush.msra.mxu0 %v239
    %390 = vmatpush.msra.mxu0 %v238
    %391 = vmatpush.msra.mxu0 %v237
    %392 = vmatmul.f32.gmra.mxu0 %v81
    %v393 = vpop.f32.mrf.mxu0
    %v394 = vadd.f32 %v365, %v393
    %395 = vmatmul.f32.gmra.mxu0 %v88
    %v396 = vpop.f32.mrf.mxu0
    %v397 = vadd.f32 %v368, %v396
    %398 = vmatmul.f32.gmra.mxu0 %v95
    %v399 = vpop.f32.mrf.mxu0
    %v400 = vadd.f32 %v371, %v399
    %401 = vmatmul.f32.gmra.mxu0 %v102
    %v402 = vpop.f32.mrf.mxu0
    %v403 = vadd.f32 %v374, %v402
    %404 = vdwg.mxu0
    %405 = vmatpush.msra.mxu0 %v268
    %406 = vmatpush.msra.mxu0 %v267
    %407 = vmatpush.msra.mxu0 %v266
    %408 = vmatpush.msra.mxu0 %v265
    %409 = vmatpush.msra.mxu0 %v264
    %410 = vmatpush.msra.mxu0 %v263
    %411 = vmatpush.msra.mxu0 %v262
    %412 = vmatpush.msra.mxu0 %v261
    %413 = vmatpush.msra.mxu0 %v260
    %414 = vmatpush.msra.mxu0 %v259
    %415 = vmatpush.msra.mxu0 %v258
    %416 = vmatpush.msra.mxu0 %v257
    %417 = vmatpush.msra.mxu0 %v256
    %418 = vmatpush.msra.mxu0 %v255
    %419 = vmatpush.msra.mxu0 %v254
    %420 = vmatpush.msra.mxu0 %v253
    %421 = vmatmul.f32.gmra.mxu0 %v82
    %v422 = vpop.f32.mrf.mxu0
    %v423 = vadd.f32 %v394, %v422
    %424 = vmatmul.f32.gmra.mxu0 %v89
    %v425 = vpop.f32.mrf.mxu0
    %v426 = vadd.f32 %v397, %v425
    %427 = vmatmul.f32.gmra.mxu0 %v96
    %v428 = vpop.f32.mrf.mxu0
    %v429 = vadd.f32 %v400, %v428
    %430 = vmatmul.f32.gmra.mxu0 %v103
    %v431 = vpop.f32.mrf.mxu0
    %v432 = vadd.f32 %v403, %v431
    %433 = vdwg.mxu0
    %434 = vmatpush.msra.mxu0 %v284
    %435 = vmatpush.msra.mxu0 %v283
    %436 = vmatpush.msra.mxu0 %v282
    %437 = vmatpush.msra.mxu0 %v281
    %438 = vmatpush.msra.mxu0 %v280
    %439 = vmatpush.msra.mxu0 %v279
    %440 = vmatpush.msra.mxu0 %v278
    %441 = vmatpush.msra.mxu0 %v277
    %442 = vmatpush.msra.mxu0 %v276
    %443 = vmatpush.msra.mxu0 %v275
    %444 = vmatpush.msra.mxu0 %v274
    %445 = vmatpush.msra.mxu0 %v273
    %446 = vmatpush.msra.mxu0 %v272
    %447 = vmatpush.msra.mxu0 %v271
    %448 = vmatpush.msra.mxu0 %v270
    %449 = vmatpush.msra.mxu0 %v269
    %450 = vmatmul.f32.gmra.mxu0 %v83
    %v451 = vpop.f32.mrf.mxu0
    %v452 = vadd.f32 %v423, %v451
    %453 = vmatmul.f32.gmra.mxu0 %v90
    %v454 = vpop.f32.mrf.mxu0
    %v455 = vadd.f32 %v426, %v454
    %456 = vmatmul.f32.gmra.mxu0 %v97
    %v457 = vpop.f32.mrf.mxu0
    %v458 = vadd.f32 %v429, %v457
    %459 = vmatmul.f32.gmra.mxu0 %v104
    %v460 = vpop.f32.mrf.mxu0
    %v461 = vadd.f32 %v432, %v460
    %462 = vdwg.mxu0
    %463 = vmatpush.msra.mxu0 %v300
    %464 = vmatpush.msra.mxu0 %v299
    %465 = vmatpush.msra.mxu0 %v298
    %466 = vmatpush.msra.mxu0 %v297
    %467 = vmatpush.msra.mxu0 %v296
    %468 = vmatpush.msra.mxu0 %v295
    %469 = vmatpush.msra.mxu0 %v294
    %470 = vmatpush.msra.mxu0 %v293
    %471 = vmatpush.msra.mxu0 %v292
    %472 = vmatpush.msra.mxu0 %v291
    %473 = vmatpush.msra.mxu0 %v290
    %474 = vmatpush.msra.mxu0 %v289
    %475 = vmatpush.msra.mxu0 %v288
    %476 = vmatpush.msra.mxu0 %v287
    %477 = vmatpush.msra.mxu0 %v286
    %478 = vmatpush.msra.mxu0 %v285
    %479 = vmatmul.f32.gmra.mxu0 %v84
    %v480 = vpop.f32.mrf.mxu0
    %v481 = vadd.f32 %v452, %v480
    %482 = vmatmul.f32.gmra.mxu0 %v91
    %v483 = vpop.f32.mrf.mxu0
    %v484 = vadd.f32 %v455, %v483
    %485 = vmatmul.f32.gmra.mxu0 %v98
    %v486 = vpop.f32.mrf.mxu0
    %v487 = vadd.f32 %v458, %v486
    %488 = vmatmul.f32.gmra.mxu0 %v105
    %v489 = vpop.f32.mrf.mxu0
    %v490 = vadd.f32 %v461, %v489
    %491 = vdwg.mxu0
    %492 = vmatpush.msra.mxu0 0.0
    %493 = vmatpush.msra.mxu0 0.0
    %494 = vmatpush.msra.mxu0 0.0
    %495 = vmatpush.msra.mxu0 0.0
    %496 = vmatpush.msra.mxu0 0.0
    %497 = vmatpush.msra.mxu0 0.0
    %498 = vmatpush.msra.mxu0 0.0
    %499 = vmatpush.msra.mxu0 0.0
    %500 = vmatpush.msra.mxu0 0.0
    %501 = vmatpush.msra.mxu0 0.0
    %502 = vmatpush.msra.mxu0 0.0
    %503 = vmatpush.msra.mxu0 0.0
    %504 = vmatpush.msra.mxu0 0.0
    %505 = vmatpush.msra.mxu0 0.0
    %506 = vmatpush.msra.mxu0 %v302
    %507 = vmatpush.msra.mxu0 %v301
    %508 = vmatmul.f32.gmra.mxu0 %v307
    %v509 = vpop.f32.mrf.mxu0
    %v510 = vadd.f32 %v481, %v509
    %511 = vmatmul.f32.gmra.mxu0 %v310
    %v512 = vpop.f32.mrf.mxu0
    %v513 = vadd.f32 %v484, %v512
    %514 = vmatmul.f32.gmra.mxu0 %v313
    %v515 = vpop.f32.mrf.mxu0
    %v516 = vadd.f32 %v487, %v515
    %517 = vmatmul.f32.gmra.mxu0 %v316
    %v518 = vpop.f32.mrf.mxu0
    %v519 = vadd.f32 %v490, %v518
    %520 = vdwg.mxu0
    %v521 = vmax.f32 %v510, 0.0
    %v522 = vmax.f32 %v513, 0.0
    %v523 = vmax.f32 %v516, 0.0
    %v524 = vmax.f32 %v519, 0.0
    %v525 = vld [vmem:[#allocation7] sm:$0xf]
    %v526 = vld [vmem:[#allocation7 + $0x4] sm:$0xf]
    %v527 = vld [vmem:[#allocation7 + $0x8] sm:$0xf]
    %v528 = vld [vmem:[#allocation7 + $0xc] sm:$0xf]
    %v529 = vld [vmem:[#allocation7 + $0x10] sm:$0xf]
    %v530 = vld [vmem:[#allocation7 + $0x14] sm:$0xf]
    %v531 = vld [vmem:[#allocation7 + $0x18] sm:$0xf]
    %v532 = vld [vmem:[#allocation7 + $0x1c] sm:$0xf]
    %v533 = vld [vmem:[#allocation7 + $0x20] sm:$0xf]
    %v534 = vld [vmem:[#allocation7 + $0x24] sm:$0xf]
    %v535 = vld [vmem:[#allocation7 + $0x28] sm:$0xf]
    %v536 = vld [vmem:[#allocation7 + $0x2c] sm:$0xf]
    %v537 = vld [vmem:[#allocation7 + $0x30] sm:$0xf]
    %v538 = vld [vmem:[#allocation7 + $0x34] sm:$0xf]
    %v539 = vld [vmem:[#allocation7 + $0x38] sm:$0xf]
    %v540 = vld [vmem:[#allocation7 + $0x3c] sm:$0xf]
    %v541 = vunpack.c.l.bf16 %v525
    %v542 = vunpack.c.l.bf16 %v526
    %v543 = vunpack.c.l.bf16 %v527
    %v544 = vunpack.c.l.bf16 %v528
    %v545 = vunpack.c.l.bf16 %v529
    %v546 = vunpack.c.l.bf16 %v530
    %v547 = vunpack.c.l.bf16 %v531
    %v548 = vunpack.c.l.bf16 %v532
    %v549 = vunpack.c.l.bf16 %v533
    %v550 = vunpack.c.l.bf16 %v534
    %v551 = vunpack.c.l.bf16 %v535
    %v552 = vunpack.c.l.bf16 %v536
    %v553 = vunpack.c.l.bf16 %v537
    %v554 = vunpack.c.l.bf16 %v538
    %v555 = vunpack.c.l.bf16 %v539
    %v556 = vunpack.c.l.bf16 %v540
    %v557 = vld [vmem:[#allocation8 + $0x1] sm:$0x1]
    %v558 = vperm.slane %v557, 0
    %559 = vmatpush.msra.mxu0 %v556
    %560 = vmatpush.msra.mxu0 %v555
    %561 = vmatpush.msra.mxu0 %v554
    %562 = vmatpush.msra.mxu0 %v553
    %563 = vmatpush.msra.mxu0 %v552
    %564 = vmatpush.msra.mxu0 %v551
    %565 = vmatpush.msra.mxu0 %v550
    %566 = vmatpush.msra.mxu0 %v549
    %567 = vmatpush.msra.mxu0 %v548
    %568 = vmatpush.msra.mxu0 %v547
    %569 = vmatpush.msra.mxu0 %v546
    %570 = vmatpush.msra.mxu0 %v545
    %571 = vmatpush.msra.mxu0 %v544
    %572 = vmatpush.msra.mxu0 %v543
    %573 = vmatpush.msra.mxu0 %v542
    %574 = vmatpush.msra.mxu0 %v541
    %575 = vmatmul.f32.gmra.mxu0 %v521
    %v576 = vpop.f32.mrf.mxu0
    %v577 = vadd.f32 %v558, %v576
    %578 = vmatmul.f32.gmra.mxu0 %v522
    %v579 = vpop.f32.mrf.mxu0
    %v580 = vadd.f32 %v558, %v579
    %581 = vmatmul.f32.gmra.mxu0 %v523
    %v582 = vpop.f32.mrf.mxu0
    %v583 = vadd.f32 %v558, %v582
    %584 = vmatmul.f32.gmra.mxu0 %v524
    %v585 = vpop.f32.mrf.mxu0
    %v586 = vadd.f32 %v558, %v585
    %587 = vdwg.mxu0
    %v588 = vmax.f32 %v577, 0.0
    %v589 = vmax.f32 %v580, 0.0
    %v590 = vmax.f32 %v583, 0.0
    %v591 = vmax.f32 %v586, 0.0
    %s592 = scalar_lea.vmem [#allocation7], 64
    %v593 = vld [vmem:[%s592] sm:$0xf]
    %v594 = vld [vmem:[%s592 + $0x4] sm:$0xf]
    %v595 = vld [vmem:[%s592 + $0x8] sm:$0xf]
    %v596 = vld [vmem:[%s592 + $0xc] sm:$0xf]
    %v597 = vld [vmem:[%s592 + $0x10] sm:$0xf]
    %v598 = vld [vmem:[%s592 + $0x14] sm:$0xf]
    %v599 = vld [vmem:[%s592 + $0x18] sm:$0xf]
    %v600 = vld [vmem:[%s592 + $0x1c] sm:$0xf]
    %v601 = vld [vmem:[%s592 + $0x20] sm:$0xf]
    %v602 = vld [vmem:[%s592 + $0x24] sm:$0xf]
    %v603 = vld [vmem:[%s592 + $0x28] sm:$0xf]
    %v604 = vld [vmem:[%s592 + $0x2c] sm:$0xf]
    %v605 = vld [vmem:[%s592 + $0x30] sm:$0xf]
    %v606 = vld [vmem:[%s592 + $0x34] sm:$0xf]
    %v607 = vld [vmem:[%s592 + $0x38] sm:$0xf]
    %v608 = vld [vmem:[%s592 + $0x3c] sm:$0xf]
    %v609 = vunpack.c.l.bf16 %v593
    %v610 = vunpack.c.l.bf16 %v594
    %v611 = vunpack.c.l.bf16 %v595
    %v612 = vunpack.c.l.bf16 %v596
    %v613 = vunpack.c.l.bf16 %v597
    %v614 = vunpack.c.l.bf16 %v598
    %v615 = vunpack.c.l.bf16 %v599
    %v616 = vunpack.c.l.bf16 %v600
    %v617 = vunpack.c.l.bf16 %v601
    %v618 = vunpack.c.l.bf16 %v602
    %v619 = vunpack.c.l.bf16 %v603
    %v620 = vunpack.c.l.bf16 %v604
    %v621 = vunpack.c.l.bf16 %v605
    %v622 = vunpack.c.l.bf16 %v606
    %v623 = vunpack.c.l.bf16 %v607
    %v624 = vunpack.c.l.bf16 %v608
    %v625 = vld [vmem:[#allocation8 + $0x2] sm:$0x1]
    %v626 = vperm.slane %v625, 0
    %627 = vmatpush.msra.mxu0 %v624
    %628 = vmatpush.msra.mxu0 %v623
    %629 = vmatpush.msra.mxu0 %v622
    %630 = vmatpush.msra.mxu0 %v621
    %631 = vmatpush.msra.mxu0 %v620
    %632 = vmatpush.msra.mxu0 %v619
    %633 = vmatpush.msra.mxu0 %v618
    %634 = vmatpush.msra.mxu0 %v617
    %635 = vmatpush.msra.mxu0 %v616
    %636 = vmatpush.msra.mxu0 %v615
    %637 = vmatpush.msra.mxu0 %v614
    %638 = vmatpush.msra.mxu0 %v613
    %639 = vmatpush.msra.mxu0 %v612
    %640 = vmatpush.msra.mxu0 %v611
    %641 = vmatpush.msra.mxu0 %v610
    %642 = vmatpush.msra.mxu0 %v609
    %643 = vmatmul.f32.gmra.mxu0 %v588
    %v644 = vpop.f32.mrf.mxu0
    %v645 = vadd.f32 %v626, %v644
    %646 = vmatmul.f32.gmra.mxu0 %v589
    %v647 = vpop.f32.mrf.mxu0
    %v648 = vadd.f32 %v626, %v647
    %649 = vmatmul.f32.gmra.mxu0 %v590
    %v650 = vpop.f32.mrf.mxu0
    %v651 = vadd.f32 %v626, %v650
    %652 = vmatmul.f32.gmra.mxu0 %v591
    %v653 = vpop.f32.mrf.mxu0
    %v654 = vadd.f32 %v626, %v653
    %655 = vdwg.mxu0
    %v656 = vmax.f32 %v645, 0.0
    %v657 = vmax.f32 %v648, 0.0
    %v658 = vmax.f32 %v651, 0.0
    %v659 = vmax.f32 %v654, 0.0
    %s660 = scalar_lea.vmem [#allocation7], 128
    %v661 = vld [vmem:[%s660] sm:$0xf]
    %v662 = vld [vmem:[%s660 + $0x4] sm:$0xf]
    %v663 = vld [vmem:[%s660 + $0x8] sm:$0xf]
    %v664 = vld [vmem:[%s660 + $0xc] sm:$0xf]
    %v665 = vld [vmem:[%s660 + $0x10] sm:$0xf]
    %v666 = vld [vmem:[%s660 + $0x14] sm:$0xf]
    %v667 = vld [vmem:[%s660 + $0x18] sm:$0xf]
    %v668 = vld [vmem:[%s660 + $0x1c] sm:$0xf]
    %v669 = vld [vmem:[%s660 + $0x20] sm:$0xf]
    %v670 = vld [vmem:[%s660 + $0x24] sm:$0xf]
    %v671 = vld [vmem:[%s660 + $0x28] sm:$0xf]
    %v672 = vld [vmem:[%s660 + $0x2c] sm:$0xf]
    %v673 = vld [vmem:[%s660 + $0x30] sm:$0xf]
    %v674 = vld [vmem:[%s660 + $0x34] sm:$0xf]
    %v675 = vld [vmem:[%s660 + $0x38] sm:$0xf]
    %v676 = vld [vmem:[%s660 + $0x3c] sm:$0xf]
    %v677 = vunpack.c.l.bf16 %v661
    %v678 = vunpack.c.l.bf16 %v662
    %v679 = vunpack.c.l.bf16 %v663
    %v680 = vunpack.c.l.bf16 %v664
    %v681 = vunpack.c.l.bf16 %v665
    %v682 = vunpack.c.l.bf16 %v666
    %v683 = vunpack.c.l.bf16 %v667
    %v684 = vunpack.c.l.bf16 %v668
    %v685 = vunpack.c.l.bf16 %v669
    %v686 = vunpack.c.l.bf16 %v670
    %v687 = vunpack.c.l.bf16 %v671
    %v688 = vunpack.c.l.bf16 %v672
    %v689 = vunpack.c.l.bf16 %v673
    %v690 = vunpack.c.l.bf16 %v674
    %v691 = vunpack.c.l.bf16 %v675
    %v692 = vunpack.c.l.bf16 %v676
    %v693 = vld [vmem:[#allocation8 + $0x3] sm:$0x1]
    %v694 = vperm.slane %v693, 0
    %695 = vmatpush.msra.mxu0 %v692
    %696 = vmatpush.msra.mxu0 %v691
    %697 = vmatpush.msra.mxu0 %v690
    %698 = vmatpush.msra.mxu0 %v689
    %699 = vmatpush.msra.mxu0 %v688
    %700 = vmatpush.msra.mxu0 %v687
    %701 = vmatpush.msra.mxu0 %v686
    %702 = vmatpush.msra.mxu0 %v685
    %703 = vmatpush.msra.mxu0 %v684
    %704 = vmatpush.msra.mxu0 %v683
    %705 = vmatpush.msra.mxu0 %v682
    %706 = vmatpush.msra.mxu0 %v681
    %707 = vmatpush.msra.mxu0 %v680
    %708 = vmatpush.msra.mxu0 %v679
    %709 = vmatpush.msra.mxu0 %v678
    %710 = vmatpush.msra.mxu0 %v677
    %711 = vmatmul.f32.gmra.mxu0 %v656
    %v712 = vpop.f32.mrf.mxu0
    %v713 = vadd.f32 %v694, %v712
    %714 = vmatmul.f32.gmra.mxu0 %v657
    %v715 = vpop.f32.mrf.mxu0
    %v716 = vadd.f32 %v694, %v715
    %717 = vmatmul.f32.gmra.mxu0 %v658
    %v718 = vpop.f32.mrf.mxu0
    %v719 = vadd.f32 %v694, %v718
    %720 = vmatmul.f32.gmra.mxu0 %v659
    %v721 = vpop.f32.mrf.mxu0
    %v722 = vadd.f32 %v694, %v721
    %723 = vdwg.mxu0
    %v724 = vmax.f32 %v713, 0.0
    %v725 = vmax.f32 %v716, 0.0
    %v726 = vmax.f32 %v719, 0.0
    %v727 = vmax.f32 %v722, 0.0
    %s728 = scalar_lea.vmem [#allocation7], 192
    %v729 = vld [vmem:[%s728] sm:$0xf]
    %v730 = vld [vmem:[%s728 + $0x4] sm:$0xf]
    %v731 = vld [vmem:[%s728 + $0x8] sm:$0xf]
    %v732 = vld [vmem:[%s728 + $0xc] sm:$0xf]
    %v733 = vld [vmem:[%s728 + $0x10] sm:$0xf]
    %v734 = vld [vmem:[%s728 + $0x14] sm:$0xf]
    %v735 = vld [vmem:[%s728 + $0x18] sm:$0xf]
    %v736 = vld [vmem:[%s728 + $0x1c] sm:$0xf]
    %v737 = vld [vmem:[%s728 + $0x20] sm:$0xf]
    %v738 = vld [vmem:[%s728 + $0x24] sm:$0xf]
    %v739 = vld [vmem:[%s728 + $0x28] sm:$0xf]
    %v740 = vld [vmem:[%s728 + $0x2c] sm:$0xf]
    %v741 = vld [vmem:[%s728 + $0x30] sm:$0xf]
    %v742 = vld [vmem:[%s728 + $0x34] sm:$0xf]
    %v743 = vld [vmem:[%s728 + $0x38] sm:$0xf]
    %v744 = vld [vmem:[%s728 + $0x3c] sm:$0xf]
    %v745 = vunpack.c.l.bf16 %v729
    %v746 = vunpack.c.l.bf16 %v730
    %v747 = vunpack.c.l.bf16 %v731
    %v748 = vunpack.c.l.bf16 %v732
    %v749 = vunpack.c.l.bf16 %v733
    %v750 = vunpack.c.l.bf16 %v734
    %v751 = vunpack.c.l.bf16 %v735
    %v752 = vunpack.c.l.bf16 %v736
    %v753 = vunpack.c.l.bf16 %v737
    %v754 = vunpack.c.l.bf16 %v738
    %v755 = vunpack.c.l.bf16 %v739
    %v756 = vunpack.c.l.bf16 %v740
    %v757 = vunpack.c.l.bf16 %v741
    %v758 = vunpack.c.l.bf16 %v742
    %v759 = vunpack.c.l.bf16 %v743
    %v760 = vunpack.c.l.bf16 %v744
    %v761 = vld [vmem:[#allocation8 + $0x4] sm:$0x1]
    %v762 = vperm.slane %v761, 0
    %763 = vmatpush.msra.mxu0 %v760
    %764 = vmatpush.msra.mxu0 %v759
    %765 = vmatpush.msra.mxu0 %v758
    %766 = vmatpush.msra.mxu0 %v757
    %767 = vmatpush.msra.mxu0 %v756
    %768 = vmatpush.msra.mxu0 %v755
    %769 = vmatpush.msra.mxu0 %v754
    %770 = vmatpush.msra.mxu0 %v753
    %771 = vmatpush.msra.mxu0 %v752
    %772 = vmatpush.msra.mxu0 %v751
    %773 = vmatpush.msra.mxu0 %v750
    %774 = vmatpush.msra.mxu0 %v749
    %775 = vmatpush.msra.mxu0 %v748
    %776 = vmatpush.msra.mxu0 %v747
    %777 = vmatpush.msra.mxu0 %v746
    %778 = vmatpush.msra.mxu0 %v745
    %779 = vmatmul.f32.gmra.mxu0 %v724
    %v780 = vpop.f32.mrf.mxu0
    %v781 = vadd.f32 %v762, %v780
    %782 = vmatmul.f32.gmra.mxu0 %v725
    %v783 = vpop.f32.mrf.mxu0
    %v784 = vadd.f32 %v762, %v783
    %785 = vmatmul.f32.gmra.mxu0 %v726
    %v786 = vpop.f32.mrf.mxu0
    %v787 = vadd.f32 %v762, %v786
    %788 = vmatmul.f32.gmra.mxu0 %v727
    %v789 = vpop.f32.mrf.mxu0
    %v790 = vadd.f32 %v762, %v789
    %791 = vdwg.mxu0
    %v792 = vmax.f32 %v781, 0.0
    %v793 = vmax.f32 %v784, 0.0
    %v794 = vmax.f32 %v787, 0.0
    %v795 = vmax.f32 %v790, 0.0
    %s796 = scalar_lea.vmem [#allocation7], 256
    %v797 = vld [vmem:[%s796] sm:$0xf]
    %v798 = vld [vmem:[%s796 + $0x4] sm:$0xf]
    %v799 = vld [vmem:[%s796 + $0x8] sm:$0xf]
    %v800 = vld [vmem:[%s796 + $0xc] sm:$0xf]
    %v801 = vld [vmem:[%s796 + $0x10] sm:$0xf]
    %v802 = vld [vmem:[%s796 + $0x14] sm:$0xf]
    %v803 = vld [vmem:[%s796 + $0x18] sm:$0xf]
    %v804 = vld [vmem:[%s796 + $0x1c] sm:$0xf]
    %v805 = vld [vmem:[%s796 + $0x20] sm:$0xf]
    %v806 = vld [vmem:[%s796 + $0x24] sm:$0xf]
    %v807 = vld [vmem:[%s796 + $0x28] sm:$0xf]
    %v808 = vld [vmem:[%s796 + $0x2c] sm:$0xf]
    %v809 = vld [vmem:[%s796 + $0x30] sm:$0xf]
    %v810 = vld [vmem:[%s796 + $0x34] sm:$0xf]
    %v811 = vld [vmem:[%s796 + $0x38] sm:$0xf]
    %v812 = vld [vmem:[%s796 + $0x3c] sm:$0xf]
    %v813 = vunpack.c.l.bf16 %v797
    %v814 = vunpack.c.l.bf16 %v798
    %v815 = vunpack.c.l.bf16 %v799
    %v816 = vunpack.c.l.bf16 %v800
    %v817 = vunpack.c.l.bf16 %v801
    %v818 = vunpack.c.l.bf16 %v802
    %v819 = vunpack.c.l.bf16 %v803
    %v820 = vunpack.c.l.bf16 %v804
    %v821 = vunpack.c.l.bf16 %v805
    %v822 = vunpack.c.l.bf16 %v806
    %v823 = vunpack.c.l.bf16 %v807
    %v824 = vunpack.c.l.bf16 %v808
    %v825 = vunpack.c.l.bf16 %v809
    %v826 = vunpack.c.l.bf16 %v810
    %v827 = vunpack.c.l.bf16 %v811
    %v828 = vunpack.c.l.bf16 %v812
    %v829 = vld [vmem:[#allocation8 + $0x5] sm:$0x1]
    %v830 = vperm.slane %v829, 0
    %831 = vmatpush.msra.mxu0 %v828
    %832 = vmatpush.msra.mxu0 %v827
    %833 = vmatpush.msra.mxu0 %v826
    %834 = vmatpush.msra.mxu0 %v825
    %835 = vmatpush.msra.mxu0 %v824
    %836 = vmatpush.msra.mxu0 %v823
    %837 = vmatpush.msra.mxu0 %v822
    %838 = vmatpush.msra.mxu0 %v821
    %839 = vmatpush.msra.mxu0 %v820
    %840 = vmatpush.msra.mxu0 %v819
    %841 = vmatpush.msra.mxu0 %v818
    %842 = vmatpush.msra.mxu0 %v817
    %843 = vmatpush.msra.mxu0 %v816
    %844 = vmatpush.msra.mxu0 %v815
    %845 = vmatpush.msra.mxu0 %v814
    %846 = vmatpush.msra.mxu0 %v813
    %847 = vmatmul.f32.gmra.mxu0 %v792
    %v848 = vpop.f32.mrf.mxu0
    %v849 = vadd.f32 %v830, %v848
    %850 = vmatmul.f32.gmra.mxu0 %v793
    %v851 = vpop.f32.mrf.mxu0
    %v852 = vadd.f32 %v830, %v851
    %853 = vmatmul.f32.gmra.mxu0 %v794
    %v854 = vpop.f32.mrf.mxu0
    %v855 = vadd.f32 %v830, %v854
    %856 = vmatmul.f32.gmra.mxu0 %v795
    %v857 = vpop.f32.mrf.mxu0
    %v858 = vadd.f32 %v830, %v857
    %859 = vdwg.mxu0
    %860 = vst [vmem:[#allocation10] sm:$0xff] %v849
    %861 = vst [vmem:[#allocation10 + $0x8] sm:$0xff] %v852
    %862 = vst [vmem:[#allocation10 + $0x10] sm:$0xff] %v855
    %863 = vst [vmem:[#allocation10 + $0x18] sm:$0xff] %v858
    // Predicated region
    $region34: #{tpu_custom_call.1} parent=1 // pred_check
      _
    $region35: #{tpu_custom_call.1} parent=1 // pred_check_branch
      %865 = sbr.rel (0) target = $region37
    $region36: #{tpu_custom_call.1} parent=1 // pred_region
      %867 = vsyncadd [#allocation4], 0
      %s868 = sshll.u32 [#allocation10], 4
      %s869 = int_to_ptr.vmem [resolvable:$true] %s868
      %s870 = sshll.u32 %s4, 4
      %s871 = int_to_ptr.hbm [resolvable:$true] %s870
      %876 = dma.vmem_to_hbm [thread:$0]  %s869, 512, %s871, [#allocation4], 128, 128, 8
    $region37: #{tpu_custom_call.1} parent=1 // pred_fallthru
      _
    // Predicated region
    $region38: #{tpu_custom_call.1} parent=1 // pred_check
      _
    $region39: #{tpu_custom_call.1} parent=1 // pred_check_branch
      %878 = sbr.rel (0) target = $region41
    $region40: #{tpu_custom_call.1} parent=1 // pred_region
      %880 = dma.done [#allocation4], 512
    $region41: #{tpu_custom_call.1} parent=1 // pred_fallthru
      _
    %881 = vsyncpa [#allocation3], 1
    %882 = vsyncpa [#allocation6], 1
    %883 = vsyncpa [#allocation9], 1
    %884 = vsyncpa [#allocation4], 1

</llo_original>
